<compile_context>
chip_gen: v6e
topology: v6e:2x2x1
jax: 0.10.0
libtpu: 0.0.40
codegen_flags: <defaults>
</compile_context>

<pallas_src>
import functools

import jax
import jax.numpy as jnp
from jax.experimental import pallas as pl
from jax.experimental.pallas import tpu as pltpu

_LANE = 128
_SUBLANE = 8


def _cdiv(a, b):
    return -(-a // b)


def _round_up(a, m):
    return _cdiv(a, m) * m


def pre_emphasis_kernel(x_ref, o_ref, carry_ref, *, coef):
    """One (tb, tt) tile.  carry_ref holds the previous time-tile's last sample."""
    j = pl.program_id(1)                              # time-tile index (innermost)
    x = x_ref[...]                                    # (tb, tt), lane-dense
    # prev[:, t] = x[:, t-1]; lane 0 is wrapped garbage, fixed below.
    prev = pltpu.roll(x, shift=1, axis=1)
    # Left neighbor of lane 0:
    #   j == 0 : reflect boundary -> x[:, 1]
    #   j  > 0 : last sample of the previous time tile (carried in VMEM scratch)
    left = jnp.where(j == 0, x[:, 1:2], carry_ref[...])          # (tb, 1)
    t_idx = jax.lax.broadcasted_iota(jnp.int32, x.shape, 1)
    prev = jnp.where(t_idx == 0, left, prev)
    o_ref[...] = x - coef * prev
    # Carry this tile's last sample for the next time tile of the same batch tile.
    carry_ref[...] = x[:, -1:]


def pre_emphasis(x, coefficient=0.97, *, target_block_bytes=2 * 1024 * 1024):
    """x: (B, T) float waveform batch. Returns (B, T) pre-emphasized signal."""
    B, T = x.shape
    assert T >= 2, "reflect padding needs at least 2 samples"
    dtype = x.dtype
    itemsize = jnp.dtype(dtype).itemsize

    # ---- time tiling: tt is a multiple of 128 lanes, ~<= budget for 8 sublanes ----
    tt_cap = max(_LANE, (target_block_bytes // (_SUBLANE * itemsize)) // _LANE * _LANE)
    Tp0 = _round_up(T, _LANE)
    nt = _cdiv(Tp0, tt_cap)
    tt = _round_up(_cdiv(Tp0, nt), _LANE)
    Tp = nt * tt

    # ---- batch tiling: tb is a multiple of 8 sublanes, block ~ target bytes ----
    Bp0 = _round_up(B, _SUBLANE)
    tb = max(_SUBLANE, (target_block_bytes // (tt * itemsize)) // _SUBLANE * _SUBLANE)
    tb = min(tb, Bp0)
    # Keep >= 2 steps on the parallel batch axis when possible (v7x megacore).
    if Bp0 >= 2 * _SUBLANE:
        tb = min(tb, (Bp0 // 2) // _SUBLANE * _SUBLANE)
    tb = max(tb, _SUBLANE)
    Bp = _round_up(Bp0, tb)
    nb = Bp // tb

    # ---- pad to full tiles (keeps every block full-width & lane-dense) ----
    xp = x
    if Bp != B or Tp != T:
        xp = jnp.pad(x, ((0, Bp - B), (0, Tp - T)))

    kernel = functools.partial(pre_emphasis_kernel, coef=float(coefficient))
    out = pl.pallas_call(
        kernel,
        out_shape=jax.ShapeDtypeStruct((Bp, Tp), dtype),
        grid_spec=pltpu.PrefetchScalarGridSpec(
            num_scalar_prefetch=0,
            grid=(nb, nt),                      # time axis innermost (sequential carry)
            in_specs=[pl.BlockSpec((tb, tt), lambda i, j: (i, j))],
            out_specs=pl.BlockSpec((tb, tt), lambda i, j: (i, j)),
            scratch_shapes=[pltpu.VMEM((tb, 1), dtype)],
        ),
        compiler_params=pltpu.CompilerParams(
            dimension_semantics=("parallel", "arbitrary")),
    )(xp)

    if Bp != B or Tp != T:
        out = out[:B, :T]
    return out


def reference(x, coefficient=0.97):
    # Pure-JAX mirror of the PyTorch forward:
    #   pad(x.unsqueeze(1), (1,0), 'reflect') -> conv1d with [-c, 1] -> squeeze.
    xpad = jnp.pad(x, ((0, 0), (1, 0)), mode="reflect")
    return xpad[:, 1:] - coefficient * xpad[:, :-1]


if __name__ == "__main__":
    key = jax.random.PRNGKey(0)

    # Case 1: small, ragged shapes (exercise batch/time padding + single time tile).
    B1, T1 = 6, 300
    x1 = jax.random.normal(key, (B1, T1), jnp.float32)
    out1 = jax.block_until_ready(pre_emphasis(x1))
    ref1 = reference(x1)
    assert out1.shape == (B1, T1)
    assert jnp.allclose(out1, ref1, atol=1e-6, rtol=1e-6), "mismatch (case 1)"

    # Case 2: force multiple time tiles (tiny block budget) to exercise the
    # carried-boundary path and multiple parallel batch tiles.
    B2, T2 = 16, 1024
    x2 = jax.random.normal(jax.random.PRNGKey(1), (B2, T2), jnp.float32)
    out2 = jax.block_until_ready(
        pre_emphasis(x2, target_block_bytes=8 * 128 * 4))
    ref2 = reference(x2)
    assert out2.shape == (B2, T2)
    assert jnp.allclose(out2, ref2, atol=1e-6, rtol=1e-6), "mismatch (case 2)"

    print("KERNEL_OK")
</pallas_src>

<mosaic_0001>
module attributes {stable_mosaic.version = 11 : i64} {
  func.func @pre_emphasis_kernel(%arg0: i32, %arg1: i32, %arg2: memref<8x384xf32, #tpu.memory_space<vmem>>, %arg3: memref<8x384xf32, #tpu.memory_space<vmem>>, %arg4: memref<8x1xf32, #tpu.memory_space<vmem>>) attributes {dimension_semantics = [#tpu.dimension_semantics<parallel>, #tpu.dimension_semantics<arbitrary>], iteration_bounds = array<i64: 1, 1>, scalar_prefetch = 0 : i64, scratch_operands = 1 : i64, tpu.core_type = #tpu.core_type<tc>, window_params = [{transform_indices = @transform_0, window_bounds = array<i64: 8, 384>}, {transform_indices = @transform_1, window_bounds = array<i64: 8, 384>}]} {
    %c0 = arith.constant 0 : index
    %c0_0 = arith.constant 0 : index
    %0 = vector.load %arg2[%c0, %c0_0] : memref<8x384xf32, #tpu.memory_space<vmem>>, vector<8x384xf32>
    %c1_i32 = arith.constant 1 : i32
    %1 = tpu.dynamic_rotate %0 by %c1_i32 dim 1 : vector<8x384xf32>, i32 -> vector<8x384xf32>
    %c0_i32 = arith.constant 0 : i32
    %2 = arith.cmpi eq, %arg1, %c0_i32 : i32
    %3 = vector.extract_strided_slice %0 {offsets = [0, 1], sizes = [8, 1], strides = [1, 1]} : vector<8x384xf32> to vector<8x1xf32>
    %c0_1 = arith.constant 0 : index
    %c0_2 = arith.constant 0 : index
    %4 = vector.load %arg4[%c0_1, %c0_2] : memref<8x1xf32, #tpu.memory_space<vmem>>, vector<8x1xf32>
    %5 = arith.select %2, %3, %4 : vector<8x1xf32>
    %6 = tpu.iota {dimensions = array<i32: 1>} : vector<8x384xi32>
    %c0_i32_3 = arith.constant 0 : i32
    %7 = vector.broadcast %c0_i32_3 : i32 to vector<8x384xi32>
    %8 = arith.cmpi eq, %6, %7 : vector<8x384xi32>
    %9 = vector.shape_cast %5 : vector<8x1xf32> to vector<8x1xf32>
    %10 = vector.broadcast %9 : vector<8x1xf32> to vector<8x384xf32>
    %11 = arith.select %8, %10, %1 : vector<8x384xi1>, vector<8x384xf32>
    %cst = arith.constant 9.700000e-01 : f32
    %12 = vector.broadcast %cst : f32 to vector<8x384xf32>
    %13 = arith.mulf %12, %11 : vector<8x384xf32>
    %14 = arith.subf %0, %13 : vector<8x384xf32>
    %c0_4 = arith.constant 0 : index
    %c0_5 = arith.constant 0 : index
    %15 = vector.load %arg3[%c0_4, %c0_5] : memref<8x384xf32, #tpu.memory_space<vmem>>, vector<8x384xf32>
    tpu.vector_store %arg3[%c0_4, %c0_5], %14 {strides = array<i32>} : memref<8x384xf32, #tpu.memory_space<vmem>>, vector<8x384xf32>,
    %16 = vector.extract_strided_slice %0 {offsets = [0, 383], sizes = [8, 1], strides = [1, 1]} : vector<8x384xf32> to vector<8x1xf32>
    %c0_6 = arith.constant 0 : index
    %c0_7 = arith.constant 0 : index
    %17 = vector.load %arg4[%c0_6, %c0_7] : memref<8x1xf32, #tpu.memory_space<vmem>>, vector<8x1xf32>
    tpu.vector_store %arg4[%c0_6, %c0_7], %16 {strides = array<i32>} : memref<8x1xf32, #tpu.memory_space<vmem>>, vector<8x1xf32>,
    return
  }
  func.func @transform_0(%arg0: i32, %arg1: i32) -> (i32, i32) {
    %c0_i32 = arith.constant 0 : i32
    return %arg0, %arg1 : i32, i32
  }
  func.func @transform_1(%arg0: i32, %arg1: i32) -> (i32, i32) {
    %c0_i32 = arith.constant 0 : i32
    return %arg0, %arg1 : i32, i32
  }
}

</mosaic_0001>

<llo_original>
// kernel: tpu_custom_call.1
$region0: #{tpu_custom_call.1}
  #allocation0 [shape = 'u32[]', space=smem, size = 0x4, offset = 0x4, fixed_abs, tag = 'smem constant byte address 0x4 - core index']
  #allocation1 [shape = 'u32[144,128]{1,0:T(1,128)}', space=vmem, size = 0x12000, scoped, tag = 'internal scratch']
  #allocation2 [shape = 'f32[8,1]{1,0:T(8,128)}', space=vmem, size = 0x1000, scoped, tag = 'scratch operand']
  %s0 = inlined_call_operand.hbm [shape: f32[8,384], index: 0, kind: input, shape index: {}]
  %s1 = inlined_call_operand.hbm [shape: f32[8,384], index: 1, kind: output, shape index: {}]
  %s2 = sld [smem:[#allocation0]]
  $region18: #{tpu_custom_call.1} parent=0
    _
  %s4 = ssub.s32 1, %s2
  %s5 = scalar_select 0, %s4, %s2
  $region1: #{tpu_custom_call.1} parent=0
    #allocation3 [shape = 'u8[12288]{0}', space=vmem, size = 0x3000, scoped, tag = 'input window, operand 0, single buffered']
    #allocation4 [shape = 's32[1]{0}', space=sflag, size = 0x4, scoped, tag = 'scoped memory for tpu_custom_call.1']
    #allocation5 [shape = 's32[1]{0}', space=sflag, size = 0x4, scoped, tag = 'scoped memory for tpu_custom_call.1']
    #allocation6 [shape = 'u8[12288]{0}', space=vmem, size = 0x3000, scoped, tag = 'output window, operand 0, single buffered']
    %6 = vsyncpa [#allocation4], 0
    %7 = vsyncpa [#allocation5], 0
    // Predicated region
    $region2: #{tpu_custom_call.1} parent=1 // pred_check
      _
    $region3: #{tpu_custom_call.1} parent=1 // pred_check_branch
      %9 = sbr.rel (0) target = $region5
    $region4: #{tpu_custom_call.1} parent=1 // pred_region
      %s11 = ssub.s32 384, 384
      %12 = vsyncadd [#allocation4], %s11
      %s14 = sshll.u32 [#allocation3], 4
      %s15 = int_to_ptr.vmem [resolvable:$true] %s14
      %17 = dma.hbm_to_vmem [thread:$0]  %s0, 384, %s15, [#allocation4]
    $region5: #{tpu_custom_call.1} parent=1 // pred_fallthru
      _
    // Predicated region
    $region6: #{tpu_custom_call.1} parent=1 // pred_check
      _
    $region7: #{tpu_custom_call.1} parent=1 // pred_check_branch
      %19 = sbr.rel (0) target = $region9
    $region8: #{tpu_custom_call.1} parent=1 // pred_region
      %20 = dma.done [#allocation4], 384
    $region9: #{tpu_custom_call.1} parent=1 // pred_fallthru
      _
    %v21 = vld [vmem:[#allocation3] sm:$0xff]
    %v22 = vld [vmem:[#allocation3 + $0x8] sm:$0xff]
    %v23 = vld [vmem:[#allocation3 + $0x10] sm:$0xff]
    %24 = vrot.lane.b32.xlu0 %v21, 1
    %v25 = vpop.permute.xlu0 %24
    %26 = vrot.lane.b32.xlu0 %v22, 1
    %v27 = vpop.permute.xlu0 %26
    %28 = vrot.lane.b32.xlu0 %v23, 1
    %v29 = vpop.permute.xlu0 %28
    %v30 = vlaneseq
    %v31 = vand.u32 %v30, 127
    %vm32 = vcmp.lt.s32.totalorder %v31, 1
    %v33 = vsel %vm32, %v27, %v29
    %v34 = vsel %vm32, %v25, %v27
    %v35 = vsel %vm32, %v29, %v25
    %p36 = scmp.eq.s32.totalorder 0, 0
    %v37 = vld [vmem:[#allocation2] sm:$0xff]
    %s38 = scalar_select %p36, 1, 0
    %v39 = vstv %s38
    %vm40 = vcmp.eq.s32.totalorder %v39, 1
    %42 = vrot.lane.b32.xlu0 %v37, 1
    %v43 = vpop.permute.xlu0 %42
    %v45 = vsel %vm40, %v21, %v43
    %v46 = vadd.s32 %v31, 128
    %v47 = vadd.s32 %v31, 256
    %vm48 = vcmp.eq.s32.totalorder %v31, 0
    %vm49 = vcmp.eq.s32.totalorder %v46, 0
    %vm50 = vcmp.eq.s32.totalorder %v47, 0
    %52 = vset.pattern.permute.xlu0 1
    %53 = vperm.xlu0 %52, %v45
    %v54 = vpop.permute.xlu0 %53
    %v56 = vsel %vm48, %v54, %v35
    %v57 = vsel %vm49, %v54, %v34
    %v58 = vsel %vm50, %v54, %v33
    %v59 = vmul.f32 %v56, 0.97
    %v60 = vmul.f32 %v57, 0.97
    %v61 = vmul.f32 %v58, 0.97
    %v62 = vsub.f32 %v21, %v59
    %v63 = vsub.f32 %v22, %v60
    %v64 = vsub.f32 %v23, %v61
    %65 = vst [vmem:[#allocation6] sm:$0xff] %v62
    %66 = vst [vmem:[#allocation6 + $0x8] sm:$0xff] %v63
    %67 = vst [vmem:[#allocation6 + $0x10] sm:$0xff] %v64
    %69 = vrot.lane.b32.xlu0 %v23, 1
    %v70 = vpop.permute.xlu0 %69
    %vm72 = vcmask 7168
    %73 = vst.msk [vmem:[#allocation2] sm:$0xff] %vm72, %v70
    // Predicated region
    $region10: #{tpu_custom_call.1} parent=1 // pred_check
      _
    $region11: #{tpu_custom_call.1} parent=1 // pred_check_branch
      %75 = sbr.rel (0) target = $region13
    $region12: #{tpu_custom_call.1} parent=1 // pred_region
      %s77 = ssub.s32 384, 384
      %78 = vsyncadd [#allocation5], %s77
      %s80 = sshll.u32 [#allocation6], 4
      %s81 = int_to_ptr.vmem [resolvable:$true] %s80
      %83 = dma.vmem_to_hbm [thread:$0]  %s81, 384, %s1, [#allocation5]
    $region13: #{tpu_custom_call.1} parent=1 // pred_fallthru
      _
    // Predicated region
    $region14: #{tpu_custom_call.1} parent=1 // pred_check
      _
    $region15: #{tpu_custom_call.1} parent=1 // pred_check_branch
      %85 = sbr.rel (0) target = $region17
    $region16: #{tpu_custom_call.1} parent=1 // pred_region
      %86 = dma.done [#allocation5], 384
    $region17: #{tpu_custom_call.1} parent=1 // pred_fallthru
      _
    %87 = vsyncpa [#allocation4], 1
    %88 = vsyncpa [#allocation5], 1

</llo_original>
